<compile_context>
chip_gen: v7x
topology: tpu7x:2x2x1
jax: 0.10.0
libtpu: 0.0.40
codegen_flags: <defaults>
</compile_context>

<pallas_src>
import functools

import jax
import jax.numpy as jnp
from jax.experimental import pallas as pl
from jax.experimental.pallas import tpu as pltpu

LANE = 128        # vreg lane width  (last dim)
SUBLANE = 8       # vreg sublane width (second-to-last dim)
MAX_TILE_B = 512  # mem-bound sweet spot per measured streaming roofline data


def _round_up(x, m):
    return ((x + m - 1) // m) * m


def _pick_batch_tiling(B):
    """Pick (Bp, tile_b) with tile_b | Bp, tile_b % 8 == 0, tile_b <= 512.

    Prefers >= 2 grid steps so v7x megacore can shard the batch across both
    TensorCores.  For B a multiple of 8 (the usual GAN case) Bp == B, so the
    wrapper never pads x or slices the output."""
    Bp = _round_up(B, SUBLANE)
    cands = [t for t in range(SUBLANE, min(Bp, MAX_TILE_B) + 1, SUBLANE)
             if Bp % t == 0]
    multi = [t for t in cands if Bp // t >= 2]
    tile_b = max(multi) if multi else max(cands)
    if tile_b < 64 and Bp > 8 * tile_b:
        # Awkward batch (e.g. 8 * large prime): accept a little padding rather
        # than hundreds of tiny grid steps (~0.35us per-step overhead each).
        tile_b = min(MAX_TILE_B, 256)
        Bp = _round_up(Bp, tile_b)
    return Bp, tile_b


def gan_mlp_kernel(x_ref,
                   w1_ref, b1_ref,
                   w2_ref, b2_ref,
                   w3_ref, b3_ref,
                   w4_ref, b4_ref,
                   o_ref):
    """Fused fc1..fc4 + ReLU on one batch tile.

    Weight/bias tiles are VMEM-resident across the whole grid; only the x tile
    and out tile stream.  Matmul operands are cast to the (bf16) weight dtype
    for single-pass MXU; accumulation, bias add and ReLU stay f32."""
    def layer(h, w_ref, b_ref):
        y = jnp.dot(h.astype(w_ref.dtype), w_ref[...],
                    preferred_element_type=jnp.float32)
        return jnp.maximum(y + b_ref[...], 0.0)

    h = layer(x_ref[...], w1_ref, b1_ref)
    h = layer(h, w2_ref, b2_ref)
    h = layer(h, w3_ref, b3_ref)
    o_ref[...] = layer(h, w4_ref, b4_ref).astype(o_ref.dtype)


def prepare_gan_params(params, *, input_size, hidden_size, pitch_range,
                       output_size, weight_dtype=jnp.bfloat16):
    """One-time parameter prep (off the per-call forward path):
    transpose to (in, out), zero-pad only the hidden (lane) dims to 128,
    cast weights to bf16, biases to f32 (1, out) rows."""
    hid_p = _round_up(hidden_size, LANE)
    out_dim = pitch_range * output_size

    def prep(w, b, in_dim, in_pad, o_dim, o_pad):
        wt = jnp.zeros((in_pad, o_pad), jnp.float32)
        wt = wt.at[:in_dim, :o_dim].set(w.T.astype(jnp.float32))
        bp = jnp.zeros((1, o_pad), jnp.float32)
        bp = bp.at[0, :o_dim].set(b.astype(jnp.float32))
        return wt.astype(weight_dtype), bp

    (w1, b1), (w2, b2), (w3, b3), (w4, b4) = params
    return (
        *prep(w1, b1, input_size, input_size, hidden_size, hid_p),  # no in pad
        *prep(w2, b2, hidden_size, hid_p, hidden_size, hid_p),
        *prep(w3, b3, hidden_size, hid_p, hidden_size, hid_p),
        *prep(w4, b4, hidden_size, hid_p, out_dim, out_dim),        # no out pad
    )


@functools.partial(
    jax.jit,
    static_argnames=("batch_size", "pitch_range", "output_size", "input_size"))
def gan_forward(x, prepared, *, batch_size, pitch_range, output_size,
                input_size):
    """Fused, batch-tiled MLP kernel; reshapes like the PyTorch forward."""
    w1t, b1p, w2t, b2p, w3t, b3p, w4t, b4p = prepared
    hid_p = w1t.shape[1]
    out_dim = w4t.shape[1]                       # == pitch_range * output_size

    # x.view(-1, input_size)
    x2d = x.reshape(-1, input_size).astype(jnp.float32)
    B = x2d.shape[0]
    Bp, tile_b = _pick_batch_tiling(B)

    if Bp != B:
        # Cold path: only hit when B is not a multiple of 8 (rare for GANs).
        # Padded rows are inert (zero weights/bias columns, ReLU(0)=0).
        x_in = jnp.zeros((Bp, input_size), jnp.float32).at[:B].set(x2d)
    else:
        x_in = x2d

    grid = (Bp // tile_b,)

    def resident(shape):
        # Constant index_map: block DMA'd once, stays VMEM-resident across
        # the whole grid.
        # TODO(synk): add pipeline_mode=pl.Buffered(1) on these if hidden_size
        # is ever scaled toward v7x's 64 MiB VMEM (bf16 weights already halve
        # the footprint).
        return pl.BlockSpec(shape, lambda i: (0, 0))

    flops = 2 * Bp * (input_size * hid_p + 2 * hid_p * hid_p + hid_p * out_dim)
    w_bytes = sum(w.size * w.dtype.itemsize for w in (w1t, w2t, w3t, w4t))
    b_bytes = 4 * (3 * hid_p + out_dim)
    bytes_accessed = 4 * Bp * (input_size + out_dim) + w_bytes + b_bytes

    out = pl.pallas_call(
        gan_mlp_kernel,
        out_shape=jax.ShapeDtypeStruct((Bp, out_dim), jnp.float32),
        grid=grid,
        in_specs=[
            pl.BlockSpec((tile_b, input_size), lambda i: (i, 0)),  # x streamed
            resident((input_size, hid_p)), resident((1, hid_p)),   # fc1
            resident((hid_p, hid_p)),      resident((1, hid_p)),   # fc2
            resident((hid_p, hid_p)),      resident((1, hid_p)),   # fc3
            resident((hid_p, out_dim)),    resident((1, out_dim)), # fc4
        ],
        out_specs=pl.BlockSpec((tile_b, out_dim), lambda i: (i, 0)),
        compiler_params=pltpu.CompilerParams(
            dimension_semantics=("parallel",)),                    # megacore
        cost_estimate=pl.CostEstimate(
            flops=flops, transcendentals=0, bytes_accessed=bytes_accessed),
    )(x_in, w1t, b1p, w2t, b2p, w3t, b3p, w4t, b4p)

    if Bp != B:
        out = out[:B]
    # x.view(batch_size, pitch_range, output_size)
    return out.reshape(batch_size, pitch_range, output_size)


# ----------------------------- references ----------------------------------


def reference_forward_mxu(x, params, *, batch_size, pitch_range, output_size,
                          input_size):
    """Pure-XLA reference mirroring the kernel numerics exactly:
    bf16 matmul operands, f32 accumulation, f32 bias add + ReLU."""
    def layer(h, w, b):
        y = jnp.dot(h.astype(jnp.bfloat16), w.T.astype(jnp.bfloat16),
                    preferred_element_type=jnp.float32)
        return jax.nn.relu(y + b.astype(jnp.float32))

    (w1, b1), (w2, b2), (w3, b3), (w4, b4) = params
    h = x.reshape(-1, input_size).astype(jnp.float32)
    h = layer(h, w1, b1)
    h = layer(h, w2, b2)
    h = layer(h, w3, b3)
    h = layer(h, w4, b4)
    return h.reshape(batch_size, pitch_range, output_size)


def reference_forward_f32(x, params, *, batch_size, pitch_range, output_size,
                          input_size):
    """Full-f32 (HIGHEST precision) reference of the PyTorch semantics."""
    prec = jax.lax.Precision.HIGHEST
    (w1, b1), (w2, b2), (w3, b3), (w4, b4) = params
    h = x.reshape(-1, input_size)
    h = jax.nn.relu(jnp.dot(h, w1.T, precision=prec) + b1)
    h = jax.nn.relu(jnp.dot(h, w2.T, precision=prec) + b2)
    h = jax.nn.relu(jnp.dot(h, w3.T, precision=prec) + b3)
    h = jax.nn.relu(jnp.dot(h, w4.T, precision=prec) + b4)
    return h.reshape(batch_size, pitch_range, output_size)


def gan_apply(x, params, prepared, *, batch_size, pitch_range, output_size,
              input_size, min_rows_for_pallas=64):
    """Dispatcher: tiny batches aren't worth the pallas_call launch/grid-step
    overhead, so fall back to the plain XLA dot chain below a row threshold."""
    rows = x.size // input_size
    if rows < min_rows_for_pallas:
        return reference_forward_mxu(
            x, params, batch_size=batch_size, pitch_range=pitch_range,
            output_size=output_size, input_size=input_size)
    return gan_forward(
        x, prepared, batch_size=batch_size, pitch_range=pitch_range,
        output_size=output_size, input_size=input_size)


def init_linear(key, in_features, out_features):
    """Deterministic init mimicking nn.Linear default (uniform +/- 1/sqrt(in))."""
    kw, kb = jax.random.split(key)
    bound = 1.0 / jnp.sqrt(jnp.float32(in_features))
    w = jax.random.uniform(kw, (out_features, in_features), jnp.float32,
                           minval=-bound, maxval=bound)
    b = jax.random.uniform(kb, (out_features,), jnp.float32,
                           minval=-bound, maxval=bound)
    return w, b


if __name__ == "__main__":
    # Small shapes consistent with the module's forward.
    input_size = 32
    hidden_size = 32
    output_size = 16
    pitch_range = 8
    batch_size = 2

    key = jax.random.PRNGKey(0)
    kx, k1, k2, k3, k4 = jax.random.split(key, 5)

    x = jax.random.normal(kx, (batch_size, input_size), jnp.float32)

    params = (
        init_linear(k1, input_size, hidden_size),
        init_linear(k2, hidden_size, hidden_size),
        init_linear(k3, hidden_size, hidden_size),
        init_linear(k4, hidden_size, pitch_range * output_size),
    )

    # One-time parameter preparation (transpose + lane-pad + bf16 cast),
    # hoisted off the per-call forward path.
    prepared = prepare_gan_params(
        params, input_size=input_size, hidden_size=hidden_size,
        pitch_range=pitch_range, output_size=output_size)

    # Exercise the Pallas path directly (the gan_apply dispatcher would route
    # this tiny batch to plain XLA in production).
    out = gan_forward(x, prepared,
                      batch_size=batch_size, pitch_range=pitch_range,
                      output_size=output_size, input_size=input_size)
    out = jax.block_until_ready(out)

    ref_mxu = reference_forward_mxu(
        x, params, batch_size=batch_size, pitch_range=pitch_range,
        output_size=output_size, input_size=input_size)
    ref_f32 = reference_forward_f32(
        x, params, batch_size=batch_size, pitch_range=pitch_range,
        output_size=output_size, input_size=input_size)

    assert out.shape == (batch_size, pitch_range, output_size)
    # Tight parity vs a reference using the identical bf16-MXU math path.
    assert jnp.allclose(out, ref_mxu, atol=1e-3, rtol=1e-3)
    # Loose parity vs the full-f32 PyTorch-semantics reference (tolerance
    # loosened per review since the dots now run single-pass bf16 on the MXU).
    assert jnp.allclose(out, ref_f32, atol=1e-1, rtol=1e-1)

    print("KERNEL_OK")
</pallas_src>

<mosaic_0001>
module attributes {stable_mosaic.version = 11 : i64} {
  func.func @gan_mlp_kernel(%arg0: i32, %arg1: memref<8x32xf32, #tpu.memory_space<vmem>>, %arg2: memref<32x128xbf16, #tpu.memory_space<vmem>>, %arg3: memref<1x128xf32, #tpu.memory_space<vmem>>, %arg4: memref<128x128xbf16, #tpu.memory_space<vmem>>, %arg5: memref<1x128xf32, #tpu.memory_space<vmem>>, %arg6: memref<128x128xbf16, #tpu.memory_space<vmem>>, %arg7: memref<1x128xf32, #tpu.memory_space<vmem>>, %arg8: memref<128x128xbf16, #tpu.memory_space<vmem>>, %arg9: memref<1x128xf32, #tpu.memory_space<vmem>>, %arg10: memref<8x128xf32, #tpu.memory_space<vmem>>) attributes {dimension_semantics = [#tpu.dimension_semantics<parallel>], iteration_bounds = array<i64: 1>, scalar_prefetch = 0 : i64, scratch_operands = 0 : i64, tpu.core_type = #tpu.core_type<tc>, window_params = [{transform_indices = @transform_0, window_bounds = array<i64: 8, 32>}, {pipeline_mode = #tpu.pipeline_mode<synchronous>, transform_indices = @transform_1, window_bounds = array<i64: 32, 128>}, {pipeline_mode = #tpu.pipeline_mode<synchronous>, transform_indices = @transform_2, window_bounds = array<i64: 1, 128>}, {pipeline_mode = #tpu.pipeline_mode<synchronous>, transform_indices = @transform_3, window_bounds = array<i64: 128, 128>}, {pipeline_mode = #tpu.pipeline_mode<synchronous>, transform_indices = @transform_4, window_bounds = array<i64: 1, 128>}, {pipeline_mode = #tpu.pipeline_mode<synchronous>, transform_indices = @transform_5, window_bounds = array<i64: 128, 128>}, {pipeline_mode = #tpu.pipeline_mode<synchronous>, transform_indices = @transform_6, window_bounds = array<i64: 1, 128>}, {pipeline_mode = #tpu.pipeline_mode<synchronous>, transform_indices = @transform_7, window_bounds = array<i64: 128, 128>}, {pipeline_mode = #tpu.pipeline_mode<synchronous>, transform_indices = @transform_8, window_bounds = array<i64: 1, 128>}, {transform_indices = @transform_9, window_bounds = array<i64: 8, 128>}]} {
    %c0 = arith.constant 0 : index
    %c0_0 = arith.constant 0 : index
    %0 = vector.load %arg1[%c0, %c0_0] : memref<8x32xf32, #tpu.memory_space<vmem>>, vector<8x32xf32>
    %1 = arith.truncf %0 : vector<8x32xf32> to vector<8x32xbf16>
    %c0_1 = arith.constant 0 : index
    %c0_2 = arith.constant 0 : index
    %2 = vector.load %arg2[%c0_1, %c0_2] : memref<32x128xbf16, #tpu.memory_space<vmem>>, vector<32x128xbf16>
    %cst = arith.constant dense<0.000000e+00> : vector<8x128xf32>
    %3 = tpu.matmul %1, %2, %cst {dimension_numbers = #tpu.dot_dimension_numbers<[1], [0], [0], [1], [0, 0, 1, 1], [], []>} : vector<8x32xbf16>, vector<32x128xbf16>, vector<8x128xf32> -> vector<8x128xf32>
    %c0_3 = arith.constant 0 : index
    %c0_4 = arith.constant 0 : index
    %4 = vector.load %arg3[%c0_3, %c0_4] : memref<1x128xf32, #tpu.memory_space<vmem>>, vector<1x128xf32>
    %5 = vector.broadcast %4 : vector<1x128xf32> to vector<8x128xf32>
    %6 = arith.addf %3, %5 : vector<8x128xf32>
    %cst_5 = arith.constant 0.000000e+00 : f32
    %7 = vector.broadcast %cst_5 : f32 to vector<8x128xf32>
    %8 = arith.maximumf %6, %7 : vector<8x128xf32>
    %9 = arith.truncf %8 : vector<8x128xf32> to vector<8x128xbf16>
    %c0_6 = arith.constant 0 : index
    %c0_7 = arith.constant 0 : index
    %10 = vector.load %arg4[%c0_6, %c0_7] : memref<128x128xbf16, #tpu.memory_space<vmem>>, vector<128x128xbf16>
    %cst_8 = arith.constant dense<0.000000e+00> : vector<8x128xf32>
    %11 = tpu.matmul %9, %10, %cst_8 {dimension_numbers = #tpu.dot_dimension_numbers<[1], [0], [0], [1], [0, 0, 1, 1], [], []>} : vector<8x128xbf16>, vector<128x128xbf16>, vector<8x128xf32> -> vector<8x128xf32>
    %c0_9 = arith.constant 0 : index
    %c0_10 = arith.constant 0 : index
    %12 = vector.load %arg5[%c0_9, %c0_10] : memref<1x128xf32, #tpu.memory_space<vmem>>, vector<1x128xf32>
    %13 = vector.broadcast %12 : vector<1x128xf32> to vector<8x128xf32>
    %14 = arith.addf %11, %13 : vector<8x128xf32>
    %cst_11 = arith.constant 0.000000e+00 : f32
    %15 = vector.broadcast %cst_11 : f32 to vector<8x128xf32>
    %16 = arith.maximumf %14, %15 : vector<8x128xf32>
    %17 = arith.truncf %16 : vector<8x128xf32> to vector<8x128xbf16>
    %c0_12 = arith.constant 0 : index
    %c0_13 = arith.constant 0 : index
    %18 = vector.load %arg6[%c0_12, %c0_13] : memref<128x128xbf16, #tpu.memory_space<vmem>>, vector<128x128xbf16>
    %cst_14 = arith.constant dense<0.000000e+00> : vector<8x128xf32>
    %19 = tpu.matmul %17, %18, %cst_14 {dimension_numbers = #tpu.dot_dimension_numbers<[1], [0], [0], [1], [0, 0, 1, 1], [], []>} : vector<8x128xbf16>, vector<128x128xbf16>, vector<8x128xf32> -> vector<8x128xf32>
    %c0_15 = arith.constant 0 : index
    %c0_16 = arith.constant 0 : index
    %20 = vector.load %arg7[%c0_15, %c0_16] : memref<1x128xf32, #tpu.memory_space<vmem>>, vector<1x128xf32>
    %21 = vector.broadcast %20 : vector<1x128xf32> to vector<8x128xf32>
    %22 = arith.addf %19, %21 : vector<8x128xf32>
    %cst_17 = arith.constant 0.000000e+00 : f32
    %23 = vector.broadcast %cst_17 : f32 to vector<8x128xf32>
    %24 = arith.maximumf %22, %23 : vector<8x128xf32>
    %25 = arith.truncf %24 : vector<8x128xf32> to vector<8x128xbf16>
    %c0_18 = arith.constant 0 : index
    %c0_19 = arith.constant 0 : index
    %26 = vector.load %arg8[%c0_18, %c0_19] : memref<128x128xbf16, #tpu.memory_space<vmem>>, vector<128x128xbf16>
    %cst_20 = arith.constant dense<0.000000e+00> : vector<8x128xf32>
    %27 = tpu.matmul %25, %26, %cst_20 {dimension_numbers = #tpu.dot_dimension_numbers<[1], [0], [0], [1], [0, 0, 1, 1], [], []>} : vector<8x128xbf16>, vector<128x128xbf16>, vector<8x128xf32> -> vector<8x128xf32>
    %c0_21 = arith.constant 0 : index
    %c0_22 = arith.constant 0 : index
    %28 = vector.load %arg9[%c0_21, %c0_22] : memref<1x128xf32, #tpu.memory_space<vmem>>, vector<1x128xf32>
    %29 = vector.broadcast %28 : vector<1x128xf32> to vector<8x128xf32>
    %30 = arith.addf %27, %29 : vector<8x128xf32>
    %cst_23 = arith.constant 0.000000e+00 : f32
    %31 = vector.broadcast %cst_23 : f32 to vector<8x128xf32>
    %32 = arith.maximumf %30, %31 : vector<8x128xf32>
    %c0_24 = arith.constant 0 : index
    %c0_25 = arith.constant 0 : index
    %33 = vector.load %arg10[%c0_24, %c0_25] : memref<8x128xf32, #tpu.memory_space<vmem>>, vector<8x128xf32>
    tpu.vector_store %arg10[%c0_24, %c0_25], %32 {strides = array<i32>} : memref<8x128xf32, #tpu.memory_space<vmem>>, vector<8x128xf32>,
    return
  }
  func.func @transform_0(%arg0: i32) -> (i32, i32) {
    %c0_i32 = arith.constant 0 : i32
    %c0_i32_0 = arith.constant 0 : i32
    return %arg0, %c0_i32 : i32, i32
  }
  func.func @transform_1(%arg0: i32) -> (i32, i32) {
    %c0_i32 = arith.constant 0 : i32
    %c0_i32_0 = arith.constant 0 : i32
    %c0_i32_1 = arith.constant 0 : i32
    return %c0_i32, %c0_i32_0 : i32, i32
  }
  func.func @transform_2(%arg0: i32) -> (i32, i32) {
    %c0_i32 = arith.constant 0 : i32
    %c0_i32_0 = arith.constant 0 : i32
    %c0_i32_1 = arith.constant 0 : i32
    return %c0_i32, %c0_i32_0 : i32, i32
  }
  func.func @transform_3(%arg0: i32) -> (i32, i32) {
    %c0_i32 = arith.constant 0 : i32
    %c0_i32_0 = arith.constant 0 : i32
    %c0_i32_1 = arith.constant 0 : i32
    return %c0_i32, %c0_i32_0 : i32, i32
  }
  func.func @transform_4(%arg0: i32) -> (i32, i32) {
    %c0_i32 = arith.constant 0 : i32
    %c0_i32_0 = arith.constant 0 : i32
    %c0_i32_1 = arith.constant 0 : i32
    return %c0_i32, %c0_i32_0 : i32, i32
  }
  func.func @transform_5(%arg0: i32) -> (i32, i32) {
    %c0_i32 = arith.constant 0 : i32
    %c0_i32_0 = arith.constant 0 : i32
    %c0_i32_1 = arith.constant 0 : i32
    return %c0_i32, %c0_i32_0 : i32, i32
  }
  func.func @transform_6(%arg0: i32) -> (i32, i32) {
    %c0_i32 = arith.constant 0 : i32
    %c0_i32_0 = arith.constant 0 : i32
    %c0_i32_1 = arith.constant 0 : i32
    return %c0_i32, %c0_i32_0 : i32, i32
  }
  func.func @transform_7(%arg0: i32) -> (i32, i32) {
    %c0_i32 = arith.constant 0 : i32
    %c0_i32_0 = arith.constant 0 : i32
    %c0_i32_1 = arith.constant 0 : i32
    return %c0_i32, %c0_i32_0 : i32, i32
  }
  func.func @transform_8(%arg0: i32) -> (i32, i32) {
    %c0_i32 = arith.constant 0 : i32
    %c0_i32_0 = arith.constant 0 : i32
    %c0_i32_1 = arith.constant 0 : i32
    return %c0_i32, %c0_i32_0 : i32, i32
  }
  func.func @transform_9(%arg0: i32) -> (i32, i32) {
    %c0_i32 = arith.constant 0 : i32
    %c0_i32_0 = arith.constant 0 : i32
    return %arg0, %c0_i32 : i32, i32
  }
}

</mosaic_0001>

<llo_original>
// kernel: gan_forward.1
$region0: #{gan_forward.1}
  #allocation0 [shape = 'u32[]', space=smem, size = 0x4, offset = 0x4, fixed_abs, tag = 'smem constant byte address 0x4 - core index']
  #allocation1 [shape = 'u32[144,128]{1,0:T(1,128)}', space=vmem, size = 0x12000, scoped, tag = 'internal scratch']
  %s0 = inlined_call_operand.vmem [shape: f32[8,32], index: 0, kind: input, shape index: {}]
  %s1 = inlined_call_operand.hbm [shape: bf16[32,128], index: 1, kind: input, shape index: {}]
  %s2 = inlined_call_operand.vmem [shape: f32[1,128], index: 2, kind: input, shape index: {}]
  %s3 = inlined_call_operand.hbm [shape: bf16[128,128], index: 3, kind: input, shape index: {}]
  %s4 = inlined_call_operand.vmem [shape: f32[1,128], index: 4, kind: input, shape index: {}]
  %s5 = inlined_call_operand.hbm [shape: bf16[128,128], index: 5, kind: input, shape index: {}]
  %s6 = inlined_call_operand.vmem [shape: f32[1,128], index: 6, kind: input, shape index: {}]
  %s7 = inlined_call_operand.hbm [shape: bf16[128,128], index: 7, kind: input, shape index: {}]
  %s8 = inlined_call_operand.vmem [shape: f32[1,128], index: 8, kind: input, shape index: {}]
  %s9 = inlined_call_operand.vmem [shape: f32[8,128], index: 9, kind: output, shape index: {}]
  %s10 = sld [smem:[#allocation0]]
  $region62: #{gan_forward.1} parent=0
    _
  %s12 = ssub.s32 1, %s10
  %s13 = scalar_select 0, %s12, %s10
  $region1: #{gan_forward.1} parent=0
    #allocation2 [shape = 'u8[8192]{0}', space=vmem, size = 0x2000, scoped, tag = 'input window, operand 1, single buffered']
    #allocation3 [shape = 's32[1]{0}', space=sflag, size = 0x4, scoped, tag = 'scoped memory for gan_forward.1']
    #allocation4 [shape = 'u8[32768]{0}', space=vmem, size = 0x8000, scoped, tag = 'input window, operand 3, single buffered']
    #allocation5 [shape = 's32[1]{0}', space=sflag, size = 0x4, scoped, tag = 'scoped memory for gan_forward.1']
    #allocation6 [shape = 'u8[32768]{0}', space=vmem, size = 0x8000, scoped, tag = 'input window, operand 5, single buffered']
    #allocation7 [shape = 'u8[32768]{0}', space=vmem, size = 0x8000, scoped, tag = 'input window, operand 7, single buffered']
    #allocation8 [shape = 's32[1]{0}', space=sflag, size = 0x4, scoped, tag = 'scoped memory for gan_forward.1']
    %14 = vsyncpa [#allocation3], 0
    %15 = vsyncpa [#allocation5], 0
    %16 = vsyncpa [#allocation8], 0
    // Predicated region
    $region2: #{gan_forward.1} parent=1 // pred_check
      _
    $region3: #{gan_forward.1} parent=1 // pred_check_branch
      %18 = sbr.rel (0) target = $region5
    $region4: #{gan_forward.1} parent=1 // pred_region
      _
    $region5: #{gan_forward.1} parent=1 // pred_fallthru
      _
    // Predicated region
    $region6: #{gan_forward.1} parent=1 // pred_check
      _
    $region7: #{gan_forward.1} parent=1 // pred_check_branch
      %20 = sbr.rel (0) target = $region9
    $region8: #{gan_forward.1} parent=1 // pred_region
      %s22 = ssub.s32 256, 256
      %23 = vsyncadd [#allocation3], %s22
      %s24 = sshll.u32 [#allocation2], 4
      %s25 = int_to_ptr.vmem [resolvable:$true] %s24
      %30 = dma.hbm_to_vmem [thread:$0]  %s1, 256, %s25, [#allocation3], 64, 64, 4
    $region9: #{gan_forward.1} parent=1 // pred_fallthru
      _
    // Predicated region
    $region10: #{gan_forward.1} parent=1 // pred_check
      _
    $region11: #{gan_forward.1} parent=1 // pred_check_branch
      %32 = sbr.rel (0) target = $region13
    $region12: #{gan_forward.1} parent=1 // pred_region
      _
    $region13: #{gan_forward.1} parent=1 // pred_fallthru
      _
    // Predicated region
    $region14: #{gan_forward.1} parent=1 // pred_check
      _
    $region15: #{gan_forward.1} parent=1 // pred_check_branch
      %34 = sbr.rel (0) target = $region17
    $region16: #{gan_forward.1} parent=1 // pred_region
      %s36 = ssub.s32 1024, 1024
      %37 = vsyncadd [#allocation5], %s36
      %s38 = sshll.u32 [#allocation4], 4
      %s39 = int_to_ptr.vmem [resolvable:$true] %s38
      %44 = dma.hbm_to_vmem [thread:$0]  %s3, 1024, %s39, [#allocation5], 64, 64, 4
    $region17: #{gan_forward.1} parent=1 // pred_fallthru
      _
    // Predicated region
    $region18: #{gan_forward.1} parent=1 // pred_check
      _
    $region19: #{gan_forward.1} parent=1 // pred_check_branch
      %46 = sbr.rel (0) target = $region21
    $region20: #{gan_forward.1} parent=1 // pred_region
      _
    $region21: #{gan_forward.1} parent=1 // pred_fallthru
      _
    // Predicated region
    $region22: #{gan_forward.1} parent=1 // pred_check
      _
    $region23: #{gan_forward.1} parent=1 // pred_check_branch
      %48 = sbr.rel (0) target = $region25
    $region24: #{gan_forward.1} parent=1 // pred_region
      %s50 = ssub.s32 1024, 1024
      %51 = vsyncadd [#allocation5], %s50
      %s52 = sshll.u32 [#allocation6], 4
      %s53 = int_to_ptr.vmem [resolvable:$true] %s52
      %58 = dma.hbm_to_vmem [thread:$0]  %s5, 1024, %s53, [#allocation5], 64, 64, 4
    $region25: #{gan_forward.1} parent=1 // pred_fallthru
      _
    // Predicated region
    $region26: #{gan_forward.1} parent=1 // pred_check
      _
    $region27: #{gan_forward.1} parent=1 // pred_check_branch
      %60 = sbr.rel (0) target = $region29
    $region28: #{gan_forward.1} parent=1 // pred_region
      _
    $region29: #{gan_forward.1} parent=1 // pred_fallthru
      _
    // Predicated region
    $region30: #{gan_forward.1} parent=1 // pred_check
      _
    $region31: #{gan_forward.1} parent=1 // pred_check_branch
      %62 = sbr.rel (0) target = $region33
    $region32: #{gan_forward.1} parent=1 // pred_region
      %s64 = ssub.s32 1024, 1024
      %65 = vsyncadd [#allocation8], %s64
      %s66 = sshll.u32 [#allocation7], 4
      %s67 = int_to_ptr.vmem [resolvable:$true] %s66
      %72 = dma.hbm_to_vmem [thread:$0]  %s7, 1024, %s67, [#allocation8], 64, 64, 4
    $region33: #{gan_forward.1} parent=1 // pred_fallthru
      _
    // Predicated region
    $region34: #{gan_forward.1} parent=1 // pred_check
      _
    $region35: #{gan_forward.1} parent=1 // pred_check_branch
      %74 = sbr.rel (0) target = $region37
    $region36: #{gan_forward.1} parent=1 // pred_region
      _
    $region37: #{gan_forward.1} parent=1 // pred_fallthru
      _
    // Predicated region
    $region38: #{gan_forward.1} parent=1 // pred_check
      _
    $region39: #{gan_forward.1} parent=1 // pred_check_branch
      %76 = sbr.rel (0) target = $region41
    $region40: #{gan_forward.1} parent=1 // pred_region
      %77 = dma.done [#allocation3], 256
    $region41: #{gan_forward.1} parent=1 // pred_fallthru
      _
    // Predicated region
    $region42: #{gan_forward.1} parent=1 // pred_check
      _
    $region43: #{gan_forward.1} parent=1 // pred_check_branch
      %79 = sbr.rel (0) target = $region45
    $region44: #{gan_forward.1} parent=1 // pred_region
      %80 = dma.done [#allocation5], 1024
    $region45: #{gan_forward.1} parent=1 // pred_fallthru
      _
    // Predicated region
    $region46: #{gan_forward.1} parent=1 // pred_check
      _
    $region47: #{gan_forward.1} parent=1 // pred_check_branch
      %82 = sbr.rel (0) target = $region49
    $region48: #{gan_forward.1} parent=1 // pred_region
      %83 = dma.done [#allocation5], 1024
    $region49: #{gan_forward.1} parent=1 // pred_fallthru
      _
    // Predicated region
    $region50: #{gan_forward.1} parent=1 // pred_check
      _
    $region51: #{gan_forward.1} parent=1 // pred_check_branch
      %85 = sbr.rel (0) target = $region53
    $region52: #{gan_forward.1} parent=1 // pred_region
      %86 = dma.done [#allocation8], 1024
    $region53: #{gan_forward.1} parent=1 // pred_fallthru
      _
    %v88 = vld [vmem:[%s0] sm:$0xff]
    %v89 = vpack.c.bf16 %v88, %v88
    %v90 = vld [vmem:[#allocation2] sm:$0xf]
    %v91 = vld [vmem:[#allocation2 + $0x4] sm:$0xf]
    %v92 = vld [vmem:[#allocation2 + $0x8] sm:$0xf]
    %v93 = vld [vmem:[#allocation2 + $0xc] sm:$0xf]
    %v94 = vld [vmem:[%s2] sm:$0x1]
    %v96 = vlaneseq
    %v97 = vshrl.u32 %v96, 7
    %v98 = vsub.s32 0, %v97
    %v99 = vrot.slane %v94, %v98
    %v105 = vunpack.c.l.b16 %v90
    %v106 = vunpack.c.l.b16 %v91
    %v107 = vunpack.c.l.b16 %v92
    %v108 = vunpack.c.l.b16 %v93
    %v109 = vpack.c.b16 %v106, %v105
    %v110 = vpack.c.b16 %v108, %v107
    %vm113 = vcmask 261120
    %v115 = vsel %vm113, %v89, 0
    %117 = vmatprep.subr.bf16.mxu0 0
    %118 = vmatpush1.bf16.msra.mxu0 %v109
    %119 = vmatprep.subr.bf16.mxu0 0
    %120 = vmatpush1.bf16.msra.mxu0 %v110
    %121 = vmatprep.subr.bf16.mxu0 0
    %122 = vmatpush1.bf16.msra.mxu0 0
    %123 = vmatprep.subr.bf16.mxu0 0
    %124 = vmatpush1.bf16.msra.mxu0 0
    %125 = vmatprep.subr.bf16.mxu0 0
    %126 = vmatpush1.bf16.msra.mxu0 0
    %127 = vmatprep.subr.bf16.mxu0 0
    %128 = vmatpush1.bf16.msra.mxu0 0
    %129 = vmatprep.subr.bf16.mxu0 0
    %130 = vmatpush1.bf16.msra.mxu0 0
    %131 = vmatprep.subr.bf16.mxu0 0
    %132 = vmatpush1.bf16.msra.mxu0 0
    %133 = vmatprep.subr.bf16.mxu0 0
    %134 = vmatpush1.bf16.msra.mxu0 0
    %135 = vmatprep.subr.bf16.mxu0 0
    %136 = vmatpush1.bf16.msra.mxu0 0
    %137 = vmatprep.subr.bf16.mxu0 0
    %138 = vmatpush1.bf16.msra.mxu0 0
    %139 = vmatprep.subr.bf16.mxu0 0
    %140 = vmatpush1.bf16.msra.mxu0 0
    %141 = vmatprep.subr.bf16.mxu0 0
    %142 = vmatpush1.bf16.msra.mxu0 0
    %143 = vmatprep.subr.bf16.mxu0 0
    %144 = vmatpush1.bf16.msra.mxu0 0
    %145 = vmatprep.subr.bf16.mxu0 0
    %146 = vmatpush1.bf16.msra.mxu0 0
    %147 = vmatprep.subr.bf16.mxu0 0
    %148 = vmatpush1.bf16.msra.mxu0 0
    %149 = vmatprep.mubr.bf16.mxu0 0
    %150 = vmatmul.mubr.bf16.gmra.mrb[0].mxu0 %v115
    %v151 = vpop.f32.mrb[0].mxu0
    %v152 = vadd.f32 %v99, %v151
    %v153 = vpop.f32.mrb[0].mxu0
    %v154 = vpop.f32.mrb[0].mxu0
    %v155 = vpop.f32.mrb[0].mxu0
    %156 = vdwg.mxu0
    %v157 = vmax.f32 %v152, 0.0
    %v158 = vpack.c.bf16 %v157, %v157
    %v159 = vld [vmem:[#allocation4] sm:$0xf]
    %v160 = vld [vmem:[#allocation4 + $0x4] sm:$0xf]
    %v161 = vld [vmem:[#allocation4 + $0x8] sm:$0xf]
    %v162 = vld [vmem:[#allocation4 + $0xc] sm:$0xf]
    %v163 = vld [vmem:[#allocation4 + $0x10] sm:$0xf]
    %v164 = vld [vmem:[#allocation4 + $0x14] sm:$0xf]
    %v165 = vld [vmem:[#allocation4 + $0x18] sm:$0xf]
    %v166 = vld [vmem:[#allocation4 + $0x1c] sm:$0xf]
    %v167 = vld [vmem:[#allocation4 + $0x20] sm:$0xf]
    %v168 = vld [vmem:[#allocation4 + $0x24] sm:$0xf]
    %v169 = vld [vmem:[#allocation4 + $0x28] sm:$0xf]
    %v170 = vld [vmem:[#allocation4 + $0x2c] sm:$0xf]
    %v171 = vld [vmem:[#allocation4 + $0x30] sm:$0xf]
    %v172 = vld [vmem:[#allocation4 + $0x34] sm:$0xf]
    %v173 = vld [vmem:[#allocation4 + $0x38] sm:$0xf]
    %v174 = vld [vmem:[#allocation4 + $0x3c] sm:$0xf]
    %v175 = vld [vmem:[%s4] sm:$0x1]
    %v177 = vlaneseq
    %v178 = vshrl.u32 %v177, 7
    %v179 = vsub.s32 0, %v178
    %v180 = vrot.slane %v175, %v179
    %v198 = vunpack.c.l.b16 %v159
    %v199 = vunpack.c.l.b16 %v160
    %v200 = vunpack.c.l.b16 %v161
    %v201 = vunpack.c.l.b16 %v162
    %v202 = vunpack.c.l.b16 %v163
    %v203 = vunpack.c.l.b16 %v164
    %v204 = vunpack.c.l.b16 %v165
    %v205 = vunpack.c.l.b16 %v166
    %v206 = vunpack.c.l.b16 %v167
    %v207 = vunpack.c.l.b16 %v168
    %v208 = vunpack.c.l.b16 %v169
    %v209 = vunpack.c.l.b16 %v170
    %v210 = vunpack.c.l.b16 %v171
    %v211 = vunpack.c.l.b16 %v172
    %v212 = vunpack.c.l.b16 %v173
    %v213 = vunpack.c.l.b16 %v174
    %v214 = vpack.c.b16 %v199, %v198
    %v215 = vpack.c.b16 %v201, %v200
    %v216 = vpack.c.b16 %v203, %v202
    %v217 = vpack.c.b16 %v205, %v204
    %v218 = vpack.c.b16 %v207, %v206
    %v219 = vpack.c.b16 %v209, %v208
    %v220 = vpack.c.b16 %v211, %v210
    %v221 = vpack.c.b16 %v213, %v212
    %230 = vmatprep.subr.bf16.mxu0 0
    %231 = vmatpush1.bf16.msra.mxu0 %v214
    %232 = vmatprep.subr.bf16.mxu0 0
    %233 = vmatpush1.bf16.msra.mxu0 %v215
    %234 = vmatprep.subr.bf16.mxu0 0
    %235 = vmatpush1.bf16.msra.mxu0 %v216
    %236 = vmatprep.subr.bf16.mxu0 0
    %237 = vmatpush1.bf16.msra.mxu0 %v217
    %238 = vmatprep.subr.bf16.mxu0 0
    %239 = vmatpush1.bf16.msra.mxu0 %v218
    %240 = vmatprep.subr.bf16.mxu0 0
    %241 = vmatpush1.bf16.msra.mxu0 %v219
    %242 = vmatprep.subr.bf16.mxu0 0
    %243 = vmatpush1.bf16.msra.mxu0 %v220
    %244 = vmatprep.subr.bf16.mxu0 0
    %245 = vmatpush1.bf16.msra.mxu0 %v221
    %246 = vmatprep.subr.bf16.mxu0 0
    %247 = vmatpush1.bf16.msra.mxu0 0
    %248 = vmatprep.subr.bf16.mxu0 0
    %249 = vmatpush1.bf16.msra.mxu0 0
    %250 = vmatprep.subr.bf16.mxu0 0
    %251 = vmatpush1.bf16.msra.mxu0 0
    %252 = vmatprep.subr.bf16.mxu0 0
    %253 = vmatpush1.bf16.msra.mxu0 0
    %254 = vmatprep.subr.bf16.mxu0 0
    %255 = vmatpush1.bf16.msra.mxu0 0
    %256 = vmatprep.subr.bf16.mxu0 0
    %257 = vmatpush1.bf16.msra.mxu0 0
    %258 = vmatprep.subr.bf16.mxu0 0
    %259 = vmatpush1.bf16.msra.mxu0 0
    %260 = vmatprep.subr.bf16.mxu0 0
    %261 = vmatpush1.bf16.msra.mxu0 0
    %262 = vmatprep.mubr.bf16.mxu0 0
    %263 = vmatmul.mubr.bf16.gmra.mrb[0].mxu0 %v158
    %v264 = vpop.f32.mrb[0].mxu0
    %v265 = vadd.f32 %v180, %v264
    %v266 = vpop.f32.mrb[0].mxu0
    %v267 = vpop.f32.mrb[0].mxu0
    %v268 = vpop.f32.mrb[0].mxu0
    %269 = vdwg.mxu0
    %v270 = vmax.f32 %v265, 0.0
    %v271 = vpack.c.bf16 %v270, %v270
    %v272 = vld [vmem:[#allocation6] sm:$0xf]
    %v273 = vld [vmem:[#allocation6 + $0x4] sm:$0xf]
    %v274 = vld [vmem:[#allocation6 + $0x8] sm:$0xf]
    %v275 = vld [vmem:[#allocation6 + $0xc] sm:$0xf]
    %v276 = vld [vmem:[#allocation6 + $0x10] sm:$0xf]
    %v277 = vld [vmem:[#allocation6 + $0x14] sm:$0xf]
    %v278 = vld [vmem:[#allocation6 + $0x18] sm:$0xf]
    %v279 = vld [vmem:[#allocation6 + $0x1c] sm:$0xf]
    %v280 = vld [vmem:[#allocation6 + $0x20] sm:$0xf]
    %v281 = vld [vmem:[#allocation6 + $0x24] sm:$0xf]
    %v282 = vld [vmem:[#allocation6 + $0x28] sm:$0xf]
    %v283 = vld [vmem:[#allocation6 + $0x2c] sm:$0xf]
    %v284 = vld [vmem:[#allocation6 + $0x30] sm:$0xf]
    %v285 = vld [vmem:[#allocation6 + $0x34] sm:$0xf]
    %v286 = vld [vmem:[#allocation6 + $0x38] sm:$0xf]
    %v287 = vld [vmem:[#allocation6 + $0x3c] sm:$0xf]
    %v288 = vld [vmem:[%s6] sm:$0x1]
    %v290 = vlaneseq
    %v291 = vshrl.u32 %v290, 7
    %v292 = vsub.s32 0, %v291
    %v293 = vrot.slane %v288, %v292
    %v311 = vunpack.c.l.b16 %v272
    %v312 = vunpack.c.l.b16 %v273
    %v313 = vunpack.c.l.b16 %v274
    %v314 = vunpack.c.l.b16 %v275
    %v315 = vunpack.c.l.b16 %v276
    %v316 = vunpack.c.l.b16 %v277
    %v317 = vunpack.c.l.b16 %v278
    %v318 = vunpack.c.l.b16 %v279
    %v319 = vunpack.c.l.b16 %v280
    %v320 = vunpack.c.l.b16 %v281
    %v321 = vunpack.c.l.b16 %v282
    %v322 = vunpack.c.l.b16 %v283
    %v323 = vunpack.c.l.b16 %v284
    %v324 = vunpack.c.l.b16 %v285
    %v325 = vunpack.c.l.b16 %v286
    %v326 = vunpack.c.l.b16 %v287
    %v327 = vpack.c.b16 %v312, %v311
    %v328 = vpack.c.b16 %v314, %v313
    %v329 = vpack.c.b16 %v316, %v315
    %v330 = vpack.c.b16 %v318, %v317
    %v331 = vpack.c.b16 %v320, %v319
    %v332 = vpack.c.b16 %v322, %v321
    %v333 = vpack.c.b16 %v324, %v323
    %v334 = vpack.c.b16 %v326, %v325
    %343 = vmatprep.subr.bf16.mxu0 0
    %344 = vmatpush1.bf16.msra.mxu0 %v327
    %345 = vmatprep.subr.bf16.mxu0 0
    %346 = vmatpush1.bf16.msra.mxu0 %v328
    %347 = vmatprep.subr.bf16.mxu0 0
    %348 = vmatpush1.bf16.msra.mxu0 %v329
    %349 = vmatprep.subr.bf16.mxu0 0
    %350 = vmatpush1.bf16.msra.mxu0 %v330
    %351 = vmatprep.subr.bf16.mxu0 0
    %352 = vmatpush1.bf16.msra.mxu0 %v331
    %353 = vmatprep.subr.bf16.mxu0 0
    %354 = vmatpush1.bf16.msra.mxu0 %v332
    %355 = vmatprep.subr.bf16.mxu0 0
    %356 = vmatpush1.bf16.msra.mxu0 %v333
    %357 = vmatprep.subr.bf16.mxu0 0
    %358 = vmatpush1.bf16.msra.mxu0 %v334
    %359 = vmatprep.subr.bf16.mxu0 0
    %360 = vmatpush1.bf16.msra.mxu0 0
    %361 = vmatprep.subr.bf16.mxu0 0
    %362 = vmatpush1.bf16.msra.mxu0 0
    %363 = vmatprep.subr.bf16.mxu0 0
    %364 = vmatpush1.bf16.msra.mxu0 0
    %365 = vmatprep.subr.bf16.mxu0 0
    %366 = vmatpush1.bf16.msra.mxu0 0
    %367 = vmatprep.subr.bf16.mxu0 0
    %368 = vmatpush1.bf16.msra.mxu0 0
    %369 = vmatprep.subr.bf16.mxu0 0
    %370 = vmatpush1.bf16.msra.mxu0 0
    %371 = vmatprep.subr.bf16.mxu0 0
    %372 = vmatpush1.bf16.msra.mxu0 0
    %373 = vmatprep.subr.bf16.mxu0 0
    %374 = vmatpush1.bf16.msra.mxu0 0
    %375 = vmatprep.mubr.bf16.mxu0 0
    %376 = vmatmul.mubr.bf16.gmra.mrb[0].mxu0 %v271
    %v377 = vpop.f32.mrb[0].mxu0
    %v378 = vadd.f32 %v293, %v377
    %v379 = vpop.f32.mrb[0].mxu0
    %v380 = vpop.f32.mrb[0].mxu0
    %v381 = vpop.f32.mrb[0].mxu0
    %382 = vdwg.mxu0
    %v383 = vmax.f32 %v378, 0.0
    %v384 = vpack.c.bf16 %v383, %v383
    %v385 = vld [vmem:[#allocation7] sm:$0xf]
    %v386 = vld [vmem:[#allocation7 + $0x4] sm:$0xf]
    %v387 = vld [vmem:[#allocation7 + $0x8] sm:$0xf]
    %v388 = vld [vmem:[#allocation7 + $0xc] sm:$0xf]
    %v389 = vld [vmem:[#allocation7 + $0x10] sm:$0xf]
    %v390 = vld [vmem:[#allocation7 + $0x14] sm:$0xf]
    %v391 = vld [vmem:[#allocation7 + $0x18] sm:$0xf]
    %v392 = vld [vmem:[#allocation7 + $0x1c] sm:$0xf]
    %v393 = vld [vmem:[#allocation7 + $0x20] sm:$0xf]
    %v394 = vld [vmem:[#allocation7 + $0x24] sm:$0xf]
    %v395 = vld [vmem:[#allocation7 + $0x28] sm:$0xf]
    %v396 = vld [vmem:[#allocation7 + $0x2c] sm:$0xf]
    %v397 = vld [vmem:[#allocation7 + $0x30] sm:$0xf]
    %v398 = vld [vmem:[#allocation7 + $0x34] sm:$0xf]
    %v399 = vld [vmem:[#allocation7 + $0x38] sm:$0xf]
    %v400 = vld [vmem:[#allocation7 + $0x3c] sm:$0xf]
    %v401 = vld [vmem:[%s8] sm:$0x1]
    %v403 = vlaneseq
    %v404 = vshrl.u32 %v403, 7
    %v405 = vsub.s32 0, %v404
    %v406 = vrot.slane %v401, %v405
    %v424 = vunpack.c.l.b16 %v385
    %v425 = vunpack.c.l.b16 %v386
    %v426 = vunpack.c.l.b16 %v387
    %v427 = vunpack.c.l.b16 %v388
    %v428 = vunpack.c.l.b16 %v389
    %v429 = vunpack.c.l.b16 %v390
    %v430 = vunpack.c.l.b16 %v391
    %v431 = vunpack.c.l.b16 %v392
    %v432 = vunpack.c.l.b16 %v393
    %v433 = vunpack.c.l.b16 %v394
    %v434 = vunpack.c.l.b16 %v395
    %v435 = vunpack.c.l.b16 %v396
    %v436 = vunpack.c.l.b16 %v397
    %v437 = vunpack.c.l.b16 %v398
    %v438 = vunpack.c.l.b16 %v399
    %v439 = vunpack.c.l.b16 %v400
    %v440 = vpack.c.b16 %v425, %v424
    %v441 = vpack.c.b16 %v427, %v426
    %v442 = vpack.c.b16 %v429, %v428
    %v443 = vpack.c.b16 %v431, %v430
    %v444 = vpack.c.b16 %v433, %v432
    %v445 = vpack.c.b16 %v435, %v434
    %v446 = vpack.c.b16 %v437, %v436
    %v447 = vpack.c.b16 %v439, %v438
    %456 = vmatprep.subr.bf16.mxu0 0
    %457 = vmatpush1.bf16.msra.mxu0 %v440
    %458 = vmatprep.subr.bf16.mxu0 0
    %459 = vmatpush1.bf16.msra.mxu0 %v441
    %460 = vmatprep.subr.bf16.mxu0 0
    %461 = vmatpush1.bf16.msra.mxu0 %v442
    %462 = vmatprep.subr.bf16.mxu0 0
    %463 = vmatpush1.bf16.msra.mxu0 %v443
    %464 = vmatprep.subr.bf16.mxu0 0
    %465 = vmatpush1.bf16.msra.mxu0 %v444
    %466 = vmatprep.subr.bf16.mxu0 0
    %467 = vmatpush1.bf16.msra.mxu0 %v445
    %468 = vmatprep.subr.bf16.mxu0 0
    %469 = vmatpush1.bf16.msra.mxu0 %v446
    %470 = vmatprep.subr.bf16.mxu0 0
    %471 = vmatpush1.bf16.msra.mxu0 %v447
    %472 = vmatprep.subr.bf16.mxu0 0
    %473 = vmatpush1.bf16.msra.mxu0 0
    %474 = vmatprep.subr.bf16.mxu0 0
    %475 = vmatpush1.bf16.msra.mxu0 0
    %476 = vmatprep.subr.bf16.mxu0 0
    %477 = vmatpush1.bf16.msra.mxu0 0
    %478 = vmatprep.subr.bf16.mxu0 0
    %479 = vmatpush1.bf16.msra.mxu0 0
    %480 = vmatprep.subr.bf16.mxu0 0
    %481 = vmatpush1.bf16.msra.mxu0 0
    %482 = vmatprep.subr.bf16.mxu0 0
    %483 = vmatpush1.bf16.msra.mxu0 0
    %484 = vmatprep.subr.bf16.mxu0 0
    %485 = vmatpush1.bf16.msra.mxu0 0
    %486 = vmatprep.subr.bf16.mxu0 0
    %487 = vmatpush1.bf16.msra.mxu0 0
    %488 = vmatprep.mubr.bf16.mxu0 0
    %489 = vmatmul.mubr.bf16.gmra.mrb[0].mxu0 %v384
    %v490 = vpop.f32.mrb[0].mxu0
    %v491 = vadd.f32 %v406, %v490
    %v492 = vpop.f32.mrb[0].mxu0
    %v493 = vpop.f32.mrb[0].mxu0
    %v494 = vpop.f32.mrb[0].mxu0
    %495 = vdwg.mxu0
    %v496 = vmax.f32 %v491, 0.0
    %497 = vst [vmem:[%s9] sm:$0xff] %v496
    // Predicated region
    $region54: #{gan_forward.1} parent=1 // pred_check
      _
    $region55: #{gan_forward.1} parent=1 // pred_check_branch
      %499 = sbr.rel (0) target = $region57
    $region56: #{gan_forward.1} parent=1 // pred_region
      _
    $region57: #{gan_forward.1} parent=1 // pred_fallthru
      _
    // Predicated region
    $region58: #{gan_forward.1} parent=1 // pred_check
      _
    $region59: #{gan_forward.1} parent=1 // pred_check_branch
      %501 = sbr.rel (0) target = $region61
    $region60: #{gan_forward.1} parent=1 // pred_region
      _
    $region61: #{gan_forward.1} parent=1 // pred_fallthru
      _
    %502 = vsyncpa [#allocation3], 1
    %503 = vsyncpa [#allocation5], 1
    %504 = vsyncpa [#allocation8], 1

</llo_original>
